<compile_context>
chip_gen: v7x
topology: tpu7x:2x2x1
jax: 0.10.0
libtpu: 0.0.40
codegen_flags: <defaults>
</compile_context>

<pallas_src>
import functools

import jax
import jax.numpy as jnp
from jax.experimental import pallas as pl
from jax.experimental.pallas import tpu as pltpu


# ---------------------------------------------------------------------------
# Kernel
# ---------------------------------------------------------------------------
def _basic_block_kernel(x_ref, wb1_ref, s1_ref, t1_ref, wb2_ref, s2_ref, t2_ref,
                        o_ref, *, img_h):
    """Fused conv3x3+BN+ReLU -> conv3x3+BN+ReLU on a block of Nb images.

    x_ref   : (Nb*H, W*Cin)        bf16  NHWC-flattened rows (lane order = w*Cin + c)
    wbX_ref : (3*W*Cin_x, W*Cout)  bf16  banded conv weights, kh-major along rows
    sX/tX   : (1, W*Cout)          f32   folded BN scale / (BN shift + conv_bias*scale)
    o_ref   : (Nb*H, W*Cout)             lane-dense output rows
    """
    m = x_ref.shape[0]          # Nb * H rows in this block
    h = img_h

    # Hoisted halo masks (review #5): built once per grid step, reused by both conv
    # stages and both shifted taps. (row % h) keeps different images in the block
    # from bleeding into each other (review #1).
    row = jax.lax.broadcasted_iota(jnp.int32, (m, 1), 0) % h
    keep_up = (row >= 1).astype(jnp.float32)        # tap that reads row r-1 is valid
    keep_dn = (row <= h - 2).astype(jnp.float32)    # tap that reads row r+1 is valid

    def conv_bn_relu(x_f32, wb_ref, s_ref, t_ref):
        k = x_f32.shape[-1]
        n_out = wb_ref.shape[-1]
        # SAME halo in H via XLU rolls with NON-NEGATIVE shifts + hoisted masks.
        x_up = pltpu.roll(x_f32, shift=1, axis=0) * keep_up        # row r <- x[r-1]
        x_dn = pltpu.roll(x_f32, shift=m - 1, axis=0) * keep_dn    # row r <- x[r+1]
        taps = (x_up, x_f32, x_dn)                                 # kh = 0, 1, 2
        if k % 128 == 0:
            # One deep-K MXU matmul per stage (review #2): taps concatenated along
            # the lane axis -> (m, 3k) @ (3k, n_out).
            xs = jnp.concatenate(taps, axis=-1).astype(jnp.bfloat16)
            acc = jnp.dot(xs, wb_ref[...], preferred_element_type=jnp.float32)
        else:
            # Per-tap lane width not 128-aligned (tiny Cin): accumulate three dots.
            acc = jnp.zeros((m, n_out), jnp.float32)
            for t, tap in enumerate(taps):
                acc = acc + jnp.dot(tap.astype(jnp.bfloat16),
                                    wb_ref[t * k:(t + 1) * k, :],
                                    preferred_element_type=jnp.float32)
        y = acc * s_ref[...] + t_ref[...]            # folded BN (+ conv bias), f32
        return jnp.maximum(y, 0.0)                   # ReLU

    # TODO(synk): on v6e/v7x (bf16 VALUs) the roll/mask path could stay in bf16 to drop
    #             these casts; kept f32 here for portable lowering (v5e has no bf16 VPU).
    x_f32 = x_ref[...].astype(jnp.float32)
    y1 = conv_bn_relu(x_f32, wb1_ref, s1_ref, t1_ref)    # (m, W*C1), never leaves VMEM
    y2 = conv_bn_relu(y1, wb2_ref, s2_ref, t2_ref)
    o_ref[...] = y2.astype(o_ref.dtype)                  # lane-dense store


# ---------------------------------------------------------------------------
# Wrapper-side parameter folding
# ---------------------------------------------------------------------------
def fold_bn(gamma, beta, mean, var, eps=1e-5):
    scale = gamma / jnp.sqrt(var + eps)
    shift = beta - mean * scale
    return scale, shift


def band_weights(w_hwio, W):
    """Fold the kw taps + 'SAME' zero padding along W into a banded matmul weight.

    (3, 3, Cin, Cout) -> (3*W*Cin, W*Cout), kh-major along rows, with
      wb[kh*W*Cin + wi*Cin + ci, wo*Cout + co] = w[kh, wi-wo+1, ci, co] if |wi-wo| <= 1 else 0.
    """
    _, _, Cin, Cout = w_hwio.shape
    wi = jnp.arange(W)[:, None]
    wo = jnp.arange(W)[None, :]
    kw = wi - wo + 1                                     # (W, W)
    mask = (kw >= 0) & (kw <= 2)
    g = w_hwio[:, jnp.clip(kw, 0, 2), :, :]              # (3, W, W, Cin, Cout)
    g = jnp.where(mask[None, :, :, None, None], g, 0.0)
    g = jnp.transpose(g, (0, 1, 3, 2, 4))                # (kh, wi, ci, wo, co)
    return g.reshape(3 * W * Cin, W * Cout)


def _tile_over_w(v, W):
    """Per-channel (C,) -> (1, W*C) matching the slab's (w, c) lane order."""
    return jnp.tile(v.astype(jnp.float32), W).reshape(1, -1)


def fold_params(params, W):
    """Fold conv bias + eval-mode BN into per-lane scale/shift; band the conv weights."""
    Cin, C1 = params["w1"].shape[2], params["w1"].shape[3]
    s1, t1 = fold_bn(params["bn1_gamma"], params["bn1_beta"],
                     params["bn1_mean"], params["bn1_var"])
    s2, t2 = fold_bn(params["bn2_gamma"], params["bn2_beta"],
                     params["bn2_mean"], params["bn2_var"])
    t1 = t1 + params["b1"] * s1          # fold conv bias into BN shift
    t2 = t2 + params["b2"] * s2

    # TODO(synk): the band is toy-only (mostly zeros; footprint ~ W^2 * C^2). Switch to an
    #             H/W-tiled im2col path (K = 9*Cin, N = Cout) before scaling W or channels.
    band_bytes = 2 * 3 * W * W * (Cin * C1 + C1 * C1)
    assert band_bytes <= 8 * 1024 * 1024, "banded weights too large: use tiled im2col"

    return dict(
        wb1=band_weights(params["w1"].astype(jnp.float32), W).astype(jnp.bfloat16),
        wb2=band_weights(params["w2"].astype(jnp.float32), W).astype(jnp.bfloat16),
        s1=_tile_over_w(s1, W), t1=_tile_over_w(t1, W),
        s2=_tile_over_w(s2, W), t2=_tile_over_w(t2, W),
    )


def _pick_batch_tile(N, H, target_rows=256):
    """Images per grid step: fold enough batch into the matmul M dimension (~256 rows)."""
    nb = max(1, min(N, max(1, target_rows // H)))
    while N % nb:
        nb -= 1
    return nb


# ---------------------------------------------------------------------------
# Pallas-call wrappers
# ---------------------------------------------------------------------------
def basic_block_slab(x_slab, folded, *, img_h, out_dtype=jnp.float32):
    """Fused BasicBlock on an NHWC-flattened slab (N*H, W*Cin) -> (N*H, W*C1).

    Chained BasicBlocks should stay in this lane-dense slab layout between blocks
    (review #9); pass out_dtype=jnp.bfloat16 when the consumer takes bf16 (review #7).
    """
    NH, WCin = x_slab.shape
    WC1 = folded["wb1"].shape[-1]
    H = img_h
    N = NH // H
    assert N * H == NH, (NH, H)
    assert folded["wb1"].shape[0] == 3 * WCin and folded["wb2"].shape == (3 * WC1, WC1)

    Nb = _pick_batch_tile(N, H)
    assert (Nb * H) % 8 == 0 or Nb == N, "sublane-unaligned batch/H tile"
    grid = (N // Nb,)

    def weight_spec(shape):
        # TODO(synk): when grid > 1, single-buffer these grid-invariant operands
        #             (pipeline_mode=pl.Buffered(1)) to halve their VMEM on v7x.
        return pl.BlockSpec(shape, lambda n: (0, 0))

    return pl.pallas_call(
        functools.partial(_basic_block_kernel, img_h=H),
        out_shape=jax.ShapeDtypeStruct((NH, WC1), out_dtype),
        grid=grid,
        in_specs=[
            pl.BlockSpec((Nb * H, WCin), lambda n: (n, 0)),
            weight_spec((3 * WCin, WC1)),
            weight_spec((1, WC1)),
            weight_spec((1, WC1)),
            weight_spec((3 * WC1, WC1)),
            weight_spec((1, WC1)),
            weight_spec((1, WC1)),
        ],
        out_specs=pl.BlockSpec((Nb * H, WC1), lambda n: (n, 0)),
        compiler_params=pltpu.CompilerParams(
            dimension_semantics=("parallel",),        # batch tiles across TCs (v7x megacore)
            vmem_limit_bytes=32 * 1024 * 1024,        # v7x-safe scoped budget
        ),
    )(x_slab, folded["wb1"], folded["s1"], folded["t1"],
      folded["wb2"], folded["s2"], folded["t2"])


def basic_block_forward(x_nchw, params, out_dtype=jnp.float32):
    """BasicBlock forward (stride=1, no downsample, BN eval mode). NCHW in / NCHW out."""
    N, Cin, H, W = x_nchw.shape
    C1 = params["w1"].shape[-1]

    folded = fold_params(params, W)
    # NCHW -> NHWC -> lane-dense slab (N*H, W*Cin); bf16 halves input HBM traffic.
    x_slab = (jnp.transpose(x_nchw, (0, 2, 3, 1))
              .reshape(N * H, W * Cin).astype(jnp.bfloat16))
    out_slab = basic_block_slab(x_slab, folded, img_h=H, out_dtype=out_dtype)
    out = out_slab.reshape(N, H, W, C1)                  # slab -> NHWC
    return jnp.transpose(out, (0, 3, 1, 2))              # -> NCHW


# ---------------------------------------------------------------------------
# Parameters + pure-JAX reference
# ---------------------------------------------------------------------------
def init_basic_block_params(key, in_planes, planes):
    ks = jax.random.split(key, 8)
    p = {}
    # conv weights stored HWIO (3, 3, Cin, Cout) (PyTorch stores (Cout, Cin, 3, 3)).
    p["w1"] = 0.1 * jax.random.normal(ks[0], (3, 3, in_planes, planes), jnp.float32)
    p["b1"] = 0.05 * jax.random.normal(ks[1], (planes,), jnp.float32)
    p["w2"] = 0.1 * jax.random.normal(ks[2], (3, 3, planes, planes), jnp.float32)
    p["b2"] = 0.05 * jax.random.normal(ks[3], (planes,), jnp.float32)
    # BatchNorm affine params + running stats (inference mode)
    p["bn1_gamma"] = 1.0 + 0.1 * jax.random.normal(ks[4], (planes,), jnp.float32)
    p["bn1_beta"] = 0.1 * jax.random.normal(ks[5], (planes,), jnp.float32)
    p["bn1_mean"] = 0.05 * jax.random.normal(ks[6], (planes,), jnp.float32)
    p["bn1_var"] = jnp.abs(1.0 + 0.1 * jax.random.normal(ks[7], (planes,), jnp.float32))
    p["bn2_gamma"] = (1.0 + 0.1 * jax.random.normal(ks[4], (planes,), jnp.float32))[::-1]
    p["bn2_beta"] = (0.1 * jax.random.normal(ks[5], (planes,), jnp.float32))[::-1]
    p["bn2_mean"] = (0.05 * jax.random.normal(ks[6], (planes,), jnp.float32))[::-1]
    p["bn2_var"] = jnp.abs(1.0 + 0.1 * jax.random.normal(ks[7], (planes,), jnp.float32))[::-1]
    return p


def _ref_layer(x_nhwc, w_hwio, b, scale, shift):
    out = jax.lax.conv_general_dilated(
        x_nhwc, w_hwio, window_strides=(1, 1), padding="SAME",
        dimension_numbers=("NHWC", "HWIO", "NHWC"),
        precision=jax.lax.Precision.HIGHEST)
    out = out + b[None, None, None, :]
    out = out * scale[None, None, None, :] + shift[None, None, None, :]
    return jnp.maximum(out, 0.0)


def basic_block_reference(x_nchw, params, mirror_bf16):
    """Pure-JAX reference. mirror_bf16=True applies the same bf16 rounding of
    activations/weights the kernel uses (both accumulate in f32)."""
    def q(a):
        return a.astype(jnp.bfloat16).astype(jnp.float32) if mirror_bf16 else a
    x = jnp.transpose(x_nchw, (0, 2, 3, 1)).astype(jnp.float32)
    s1, t1 = fold_bn(params["bn1_gamma"], params["bn1_beta"],
                     params["bn1_mean"], params["bn1_var"])
    s2, t2 = fold_bn(params["bn2_gamma"], params["bn2_beta"],
                     params["bn2_mean"], params["bn2_var"])
    out = _ref_layer(q(x), q(params["w1"]), params["b1"], s1, t1)
    out = _ref_layer(q(out), q(params["w2"]), params["b2"], s2, t2)
    return jnp.transpose(out, (0, 3, 1, 2))


# ---------------------------------------------------------------------------
if __name__ == "__main__":
    N, IN_PLANES, PLANES, H, W = 2, 4, 8, 16, 16

    key = jax.random.PRNGKey(0)
    k_x, k_p = jax.random.split(key)
    x = jax.random.normal(k_x, (N, IN_PLANES, H, W), jnp.float32)   # NCHW like PyTorch
    params = init_basic_block_params(k_p, IN_PLANES, PLANES)

    out = jax.jit(basic_block_forward)(x, params)
    out = jax.block_until_ready(out)
    assert out.shape == (N, PLANES, H, W), out.shape

    # Check vs. a reference that mirrors the kernel's bf16 input/weight rounding.
    # (Slack allows 1-ulp bf16 re-rounding divergence at the stage-1/stage-2 boundary.)
    ref_bf16 = basic_block_reference(x, params, mirror_bf16=True)
    err = float(jnp.max(jnp.abs(out - ref_bf16)))
    assert err <= 5e-3, f"mirror-bf16 mismatch: {err}"

    # Loose check vs. the full-f32 module semantics (bf16 quantization error only).
    ref_f32 = basic_block_reference(x, params, mirror_bf16=False)
    err32 = float(jnp.max(jnp.abs(out - ref_f32)))
    assert err32 <= 5e-2, f"f32-reference mismatch: {err32}"

    print("KERNEL_OK")
</pallas_src>

<mosaic_0001>
module attributes {stable_mosaic.version = 11 : i64} {
  func.func @_basic_block_kernel(%arg0: i32, %arg1: memref<32x64xbf16, #tpu.memory_space<vmem>>, %arg2: memref<192x128xbf16, #tpu.memory_space<vmem>>, %arg3: memref<1x128xf32, #tpu.memory_space<vmem>>, %arg4: memref<1x128xf32, #tpu.memory_space<vmem>>, %arg5: memref<384x128xbf16, #tpu.memory_space<vmem>>, %arg6: memref<1x128xf32, #tpu.memory_space<vmem>>, %arg7: memref<1x128xf32, #tpu.memory_space<vmem>>, %arg8: memref<32x128xf32, #tpu.memory_space<vmem>>) attributes {dimension_semantics = [#tpu.dimension_semantics<parallel>], iteration_bounds = array<i64: 1>, scalar_prefetch = 0 : i64, scratch_operands = 0 : i64, tpu.core_type = #tpu.core_type<tc>, window_params = [{transform_indices = @transform_0, window_bounds = array<i64: 32, 64>}, {pipeline_mode = #tpu.pipeline_mode<synchronous>, transform_indices = @transform_1, window_bounds = array<i64: 192, 128>}, {pipeline_mode = #tpu.pipeline_mode<synchronous>, transform_indices = @transform_2, window_bounds = array<i64: 1, 128>}, {pipeline_mode = #tpu.pipeline_mode<synchronous>, transform_indices = @transform_3, window_bounds = array<i64: 1, 128>}, {pipeline_mode = #tpu.pipeline_mode<synchronous>, transform_indices = @transform_4, window_bounds = array<i64: 384, 128>}, {pipeline_mode = #tpu.pipeline_mode<synchronous>, transform_indices = @transform_5, window_bounds = array<i64: 1, 128>}, {pipeline_mode = #tpu.pipeline_mode<synchronous>, transform_indices = @transform_6, window_bounds = array<i64: 1, 128>}, {transform_indices = @transform_7, window_bounds = array<i64: 32, 128>}]} {
    %0 = tpu.iota {dimensions = array<i32: 0>} : vector<32x1xi32>
    %c16_i32 = arith.constant 16 : i32
    %c0_i32 = arith.constant 0 : i32
    %1 = arith.cmpi eq, %c16_i32, %c0_i32 : i32
    %c1_i32 = arith.constant 1 : i32
    %2 = arith.select %1, %c1_i32, %c16_i32 : i32
    %3 = vector.broadcast %2 : i32 to vector<32x1xi32>
    %4 = arith.remsi %0, %3 : vector<32x1xi32>
    %c0_i32_0 = arith.constant 0 : i32
    %5 = vector.broadcast %c0_i32_0 : i32 to vector<32x1xi32>
    %6 = arith.cmpi ne, %4, %5 : vector<32x1xi32>
    %c0_i32_1 = arith.constant 0 : i32
    %7 = vector.broadcast %c0_i32_1 : i32 to vector<32x1xi32>
    %8 = arith.cmpi slt, %4, %7 : vector<32x1xi32>
    %c0_i32_2 = arith.constant 0 : i32
    %9 = arith.cmpi slt, %2, %c0_i32_2 : i32
    %10 = vector.broadcast %9 : i1 to vector<32x1xi1>
    %11 = vector.broadcast %10 : vector<32x1xi1> to vector<32x1xi1>
    %12 = arith.xori %8, %11 : vector<32x1xi1>
    %13 = arith.andi %12, %6 : vector<32x1xi1>
    %14 = vector.broadcast %2 : i32 to vector<32x1xi32>
    %15 = arith.addi %4, %14 : vector<32x1xi32>
    %16 = arith.select %13, %15, %4 : vector<32x1xi1>, vector<32x1xi32>
    %c1_i32_3 = arith.constant 1 : i32
    %17 = vector.broadcast %c1_i32_3 : i32 to vector<32x1xi32>
    %18 = arith.cmpi sge, %16, %17 : vector<32x1xi32>
    %19 = arith.extui %18 : vector<32x1xi1> to vector<32x1xi32>
    %20 = arith.sitofp %19 : vector<32x1xi32> to vector<32x1xf32>
    %c14_i32 = arith.constant 14 : i32
    %21 = vector.broadcast %c14_i32 : i32 to vector<32x1xi32>
    %22 = arith.cmpi sle, %16, %21 : vector<32x1xi32>
    %23 = arith.extui %22 : vector<32x1xi1> to vector<32x1xi32>
    %24 = arith.sitofp %23 : vector<32x1xi32> to vector<32x1xf32>
    %c0 = arith.constant 0 : index
    %c0_4 = arith.constant 0 : index
    %25 = vector.load %arg1[%c0, %c0_4] : memref<32x64xbf16, #tpu.memory_space<vmem>>, vector<32x64xbf16>
    %26 = arith.extf %25 : vector<32x64xbf16> to vector<32x64xf32>
    %c1_i32_5 = arith.constant 1 : i32
    %27 = tpu.dynamic_rotate %26 by %c1_i32_5 dim 0 : vector<32x64xf32>, i32 -> vector<32x64xf32>
    %28 = vector.broadcast %20 : vector<32x1xf32> to vector<32x64xf32>
    %29 = arith.mulf %27, %28 : vector<32x64xf32>
    %c31_i32 = arith.constant 31 : i32
    %30 = tpu.dynamic_rotate %26 by %c31_i32 dim 0 : vector<32x64xf32>, i32 -> vector<32x64xf32>
    %31 = vector.broadcast %24 : vector<32x1xf32> to vector<32x64xf32>
    %32 = arith.mulf %30, %31 : vector<32x64xf32>
    %cst = arith.constant 0.000000e+00 : f32
    %33 = vector.broadcast %cst : f32 to vector<32x128xf32>
    %34 = arith.truncf %29 : vector<32x64xf32> to vector<32x64xbf16>
    %c0_6 = arith.constant 0 : index
    %c0_7 = arith.constant 0 : index
    %35 = vector.load %arg2[%c0_6, %c0_7] : memref<192x128xbf16, #tpu.memory_space<vmem>>, vector<64x128xbf16>
    %cst_8 = arith.constant dense<0.000000e+00> : vector<32x128xf32>
    %36 = tpu.matmul %34, %35, %cst_8 {dimension_numbers = #tpu.dot_dimension_numbers<[1], [0], [0], [1], [0, 0, 1, 1], [], []>} : vector<32x64xbf16>, vector<64x128xbf16>, vector<32x128xf32> -> vector<32x128xf32>
    %37 = arith.addf %33, %36 : vector<32x128xf32>
    %38 = arith.truncf %26 : vector<32x64xf32> to vector<32x64xbf16>
    %c64 = arith.constant 64 : index
    %c0_9 = arith.constant 0 : index
    %39 = vector.load %arg2[%c64, %c0_9] : memref<192x128xbf16, #tpu.memory_space<vmem>>, vector<64x128xbf16>
    %cst_10 = arith.constant dense<0.000000e+00> : vector<32x128xf32>
    %40 = tpu.matmul %38, %39, %cst_10 {dimension_numbers = #tpu.dot_dimension_numbers<[1], [0], [0], [1], [0, 0, 1, 1], [], []>} : vector<32x64xbf16>, vector<64x128xbf16>, vector<32x128xf32> -> vector<32x128xf32>
    %41 = arith.addf %37, %40 : vector<32x128xf32>
    %42 = arith.truncf %32 : vector<32x64xf32> to vector<32x64xbf16>
    %c128 = arith.constant 128 : index
    %c0_11 = arith.constant 0 : index
    %43 = vector.load %arg2[%c128, %c0_11] : memref<192x128xbf16, #tpu.memory_space<vmem>>, vector<64x128xbf16>
    %cst_12 = arith.constant dense<0.000000e+00> : vector<32x128xf32>
    %44 = tpu.matmul %42, %43, %cst_12 {dimension_numbers = #tpu.dot_dimension_numbers<[1], [0], [0], [1], [0, 0, 1, 1], [], []>} : vector<32x64xbf16>, vector<64x128xbf16>, vector<32x128xf32> -> vector<32x128xf32>
    %45 = arith.addf %41, %44 : vector<32x128xf32>
    %c0_13 = arith.constant 0 : index
    %c0_14 = arith.constant 0 : index
    %46 = vector.load %arg3[%c0_13, %c0_14] : memref<1x128xf32, #tpu.memory_space<vmem>>, vector<1x128xf32>
    %47 = vector.broadcast %46 : vector<1x128xf32> to vector<32x128xf32>
    %48 = arith.mulf %45, %47 : vector<32x128xf32>
    %c0_15 = arith.constant 0 : index
    %c0_16 = arith.constant 0 : index
    %49 = vector.load %arg4[%c0_15, %c0_16] : memref<1x128xf32, #tpu.memory_space<vmem>>, vector<1x128xf32>
    %50 = vector.broadcast %49 : vector<1x128xf32> to vector<32x128xf32>
    %51 = arith.addf %48, %50 : vector<32x128xf32>
    %cst_17 = arith.constant 0.000000e+00 : f32
    %52 = vector.broadcast %cst_17 : f32 to vector<32x128xf32>
    %53 = arith.maximumf %51, %52 : vector<32x128xf32>
    %c1_i32_18 = arith.constant 1 : i32
    %54 = tpu.dynamic_rotate %53 by %c1_i32_18 dim 0 : vector<32x128xf32>, i32 -> vector<32x128xf32>
    %55 = vector.broadcast %20 : vector<32x1xf32> to vector<32x128xf32>
    %56 = arith.mulf %54, %55 : vector<32x128xf32>
    %c31_i32_19 = arith.constant 31 : i32
    %57 = tpu.dynamic_rotate %53 by %c31_i32_19 dim 0 : vector<32x128xf32>, i32 -> vector<32x128xf32>
    %58 = vector.broadcast %24 : vector<32x1xf32> to vector<32x128xf32>
    %59 = arith.mulf %57, %58 : vector<32x128xf32>
    %60 = tpu.concatenate %56, %53, %59 in 1 : vector<32x128xf32>, vector<32x128xf32>, vector<32x128xf32> -> vector<32x384xf32>
    %61 = arith.truncf %60 : vector<32x384xf32> to vector<32x384xbf16>
    %c0_20 = arith.constant 0 : index
    %c0_21 = arith.constant 0 : index
    %62 = vector.load %arg5[%c0_20, %c0_21] : memref<384x128xbf16, #tpu.memory_space<vmem>>, vector<384x128xbf16>
    %cst_22 = arith.constant dense<0.000000e+00> : vector<32x128xf32>
    %63 = tpu.matmul %61, %62, %cst_22 {dimension_numbers = #tpu.dot_dimension_numbers<[1], [0], [0], [1], [0, 0, 1, 1], [], []>} : vector<32x384xbf16>, vector<384x128xbf16>, vector<32x128xf32> -> vector<32x128xf32>
    %c0_23 = arith.constant 0 : index
    %c0_24 = arith.constant 0 : index
    %64 = vector.load %arg6[%c0_23, %c0_24] : memref<1x128xf32, #tpu.memory_space<vmem>>, vector<1x128xf32>
    %65 = vector.broadcast %64 : vector<1x128xf32> to vector<32x128xf32>
    %66 = arith.mulf %63, %65 : vector<32x128xf32>
    %c0_25 = arith.constant 0 : index
    %c0_26 = arith.constant 0 : index
    %67 = vector.load %arg7[%c0_25, %c0_26] : memref<1x128xf32, #tpu.memory_space<vmem>>, vector<1x128xf32>
    %68 = vector.broadcast %67 : vector<1x128xf32> to vector<32x128xf32>
    %69 = arith.addf %66, %68 : vector<32x128xf32>
    %cst_27 = arith.constant 0.000000e+00 : f32
    %70 = vector.broadcast %cst_27 : f32 to vector<32x128xf32>
    %71 = arith.maximumf %69, %70 : vector<32x128xf32>
    %c0_28 = arith.constant 0 : index
    %c0_29 = arith.constant 0 : index
    %72 = vector.load %arg8[%c0_28, %c0_29] : memref<32x128xf32, #tpu.memory_space<vmem>>, vector<32x128xf32>
    tpu.vector_store %arg8[%c0_28, %c0_29], %71 {strides = array<i32>} : memref<32x128xf32, #tpu.memory_space<vmem>>, vector<32x128xf32>,
    return
  }
  func.func @transform_0(%arg0: i32) -> (i32, i32) {
    %c0_i32 = arith.constant 0 : i32
    %c0_i32_0 = arith.constant 0 : i32
    return %arg0, %c0_i32 : i32, i32
  }
  func.func @transform_1(%arg0: i32) -> (i32, i32) {
    %c0_i32 = arith.constant 0 : i32
    %c0_i32_0 = arith.constant 0 : i32
    %c0_i32_1 = arith.constant 0 : i32
    return %c0_i32, %c0_i32_0 : i32, i32
  }
  func.func @transform_2(%arg0: i32) -> (i32, i32) {
    %c0_i32 = arith.constant 0 : i32
    %c0_i32_0 = arith.constant 0 : i32
    %c0_i32_1 = arith.constant 0 : i32
    return %c0_i32, %c0_i32_0 : i32, i32
  }
  func.func @transform_3(%arg0: i32) -> (i32, i32) {
    %c0_i32 = arith.constant 0 : i32
    %c0_i32_0 = arith.constant 0 : i32
    %c0_i32_1 = arith.constant 0 : i32
    return %c0_i32, %c0_i32_0 : i32, i32
  }
  func.func @transform_4(%arg0: i32) -> (i32, i32) {
    %c0_i32 = arith.constant 0 : i32
    %c0_i32_0 = arith.constant 0 : i32
    %c0_i32_1 = arith.constant 0 : i32
    return %c0_i32, %c0_i32_0 : i32, i32
  }
  func.func @transform_5(%arg0: i32) -> (i32, i32) {
    %c0_i32 = arith.constant 0 : i32
    %c0_i32_0 = arith.constant 0 : i32
    %c0_i32_1 = arith.constant 0 : i32
    return %c0_i32, %c0_i32_0 : i32, i32
  }
  func.func @transform_6(%arg0: i32) -> (i32, i32) {
    %c0_i32 = arith.constant 0 : i32
    %c0_i32_0 = arith.constant 0 : i32
    %c0_i32_1 = arith.constant 0 : i32
    return %c0_i32, %c0_i32_0 : i32, i32
  }
  func.func @transform_7(%arg0: i32) -> (i32, i32) {
    %c0_i32 = arith.constant 0 : i32
    %c0_i32_0 = arith.constant 0 : i32
    return %arg0, %c0_i32 : i32, i32
  }
}

</mosaic_0001>

<llo_original>
// kernel: tile.23
$region0: #{tile.23}
  #allocation0 [shape = 's32[1]{0}', space=sflag, size = 0x4, scoped, tag = 'scoped memory for tile.23']
  %s0 = inlined_call_operand.vmem [shape: f32[8], index: 0, kind: input, shape index: {}]
  %s1 = inlined_call_operand.vmem [shape: f32[16,8], index: 1, kind: output, shape index: {}]
  // Predicated region
  $region2: #{tile.23} parent=0 // pred_check
    _
  $region3: #{tile.23} parent=0 // pred_check_branch
    %3 = sbr.rel (0) target = $region5
  $region4: #{tile.23} parent=0 // pred_region
    _
  $region5: #{tile.23} parent=0 // pred_fallthru
    _
  %v4 = vld [vmem:[%s0] ss:$0 sm:$0xff]
  %5 = vst [vmem:[%s1] sm:$0xff] %v4
  %s6 = scalar_lea.vmem %s1, 8
  %7 = vst [vmem:[%s6] sm:$0xff] %v4

// kernel: tile.24
$region0: #{tile.24}
  %s0 = inlined_call_operand.vmem [shape: f32[16,8], index: 0, kind: input, shape index: {}]
  %s1 = inlined_call_operand.vmem [shape: f32[1,128], index: 1, kind: output, shape index: {}]
  $region1: #{tile.24} parent=0
    #allocation0 [shape = 'u8[4096]{0}', space=vmem, size = 0x1000, scoped, tag = 'scoped mem for output reshape']
    %v2 = vld [vmem:[%s0] sm:$0x1]
    %vm3 = vcmask 64512
    %4 = vst.msk [vmem:[#allocation0] sm:$0x1] %vm3, %v2
    %s5 = scalar_lea.vmem %s0, 15
    %v6 = vld [vmem:[%s5] sm:$0x1]
    %7 = vrot.lane.b32.xlu0 %v6, 120
    %v8 = vpop.permute.xlu0 %7
    %vm9 = vcmask 1048512
    %10 = vst.msk [vmem:[#allocation0] sm:$0x1] %vm9, %v8
    %s11 = scalar_lea.vmem %s0, 14
    %v12 = vld [vmem:[%s11] sm:$0x1]
    %13 = vrot.lane.b32.xlu0 %v12, 112
    %v14 = vpop.permute.xlu0 %13
    %vm15 = vcmask 982912
    %16 = vst.msk [vmem:[#allocation0] sm:$0x1] %vm15, %v14
    %s17 = scalar_lea.vmem %s0, 13
    %v18 = vld [vmem:[%s17] sm:$0x1]
    %19 = vrot.lane.b32.xlu0 %v18, 104
    %v20 = vpop.permute.xlu0 %19
    %vm21 = vcmask 917312
    %22 = vst.msk [vmem:[#allocation0] sm:$0x1] %vm21, %v20
    %s23 = scalar_lea.vmem %s0, 12
    %v24 = vld [vmem:[%s23] sm:$0x1]
    %25 = vrot.lane.b32.xlu0 %v24, 96
    %v26 = vpop.permute.xlu0 %25
    %vm27 = vcmask 851712
    %28 = vst.msk [vmem:[#allocation0] sm:$0x1] %vm27, %v26
    %s29 = scalar_lea.vmem %s0, 11
    %v30 = vld [vmem:[%s29] sm:$0x1]
    %31 = vrot.lane.b32.xlu0 %v30, 88
    %v32 = vpop.permute.xlu0 %31
    %vm33 = vcmask 786112
    %34 = vst.msk [vmem:[#allocation0] sm:$0x1] %vm33, %v32
    %s35 = scalar_lea.vmem %s0, 10
    %v36 = vld [vmem:[%s35] sm:$0x1]
    %37 = vrot.lane.b32.xlu0 %v36, 80
    %v38 = vpop.permute.xlu0 %37
    %vm39 = vcmask 720512
    %40 = vst.msk [vmem:[#allocation0] sm:$0x1] %vm39, %v38
    %s41 = scalar_lea.vmem %s0, 9
    %v42 = vld [vmem:[%s41] sm:$0x1]
    %43 = vrot.lane.b32.xlu0 %v42, 72
    %v44 = vpop.permute.xlu0 %43
    %vm45 = vcmask 654912
    %46 = vst.msk [vmem:[#allocation0] sm:$0x1] %vm45, %v44
    %s47 = scalar_lea.vmem %s0, 8
    %v48 = vld [vmem:[%s47] sm:$0x1]
    %49 = vrot.lane.b32.xlu0 %v48, 64
    %v50 = vpop.permute.xlu0 %49
    %vm51 = vcmask 589312
    %52 = vst.msk [vmem:[#allocation0] sm:$0x1] %vm51, %v50
    %s53 = scalar_lea.vmem %s0, 7
    %v54 = vld [vmem:[%s53] sm:$0x1]
    %55 = vrot.lane.b32.xlu0 %v54, 56
    %v56 = vpop.permute.xlu0 %55
    %vm57 = vcmask 523712
    %58 = vst.msk [vmem:[#allocation0] sm:$0x1] %vm57, %v56
    %s59 = scalar_lea.vmem %s0, 6
    %v60 = vld [vmem:[%s59] sm:$0x1]
    %61 = vrot.lane.b32.xlu0 %v60, 48
    %v62 = vpop.permute.xlu0 %61
    %vm63 = vcmask 458112
    %64 = vst.msk [vmem:[#allocation0] sm:$0x1] %vm63, %v62
    %s65 = scalar_lea.vmem %s0, 5
    %v66 = vld [vmem:[%s65] sm:$0x1]
    %67 = vrot.lane.b32.xlu0 %v66, 40
    %v68 = vpop.permute.xlu0 %67
    %vm69 = vcmask 392512
    %70 = vst.msk [vmem:[#allocation0] sm:$0x1] %vm69, %v68
    %s71 = scalar_lea.vmem %s0, 4
    %v72 = vld [vmem:[%s71] sm:$0x1]
    %73 = vrot.lane.b32.xlu0 %v72, 32
    %v74 = vpop.permute.xlu0 %73
    %vm75 = vcmask 326912
    %76 = vst.msk [vmem:[#allocation0] sm:$0x1] %vm75, %v74
    %s77 = scalar_lea.vmem %s0, 3
    %v78 = vld [vmem:[%s77] sm:$0x1]
    %79 = vrot.lane.b32.xlu0 %v78, 24
    %v80 = vpop.permute.xlu0 %79
    %vm81 = vcmask 261312
    %82 = vst.msk [vmem:[#allocation0] sm:$0x1] %vm81, %v80
    %s83 = scalar_lea.vmem %s0, 2
    %v84 = vld [vmem:[%s83] sm:$0x1]
    %85 = vrot.lane.b32.xlu0 %v84, 16
    %v86 = vpop.permute.xlu0 %85
    %vm87 = vcmask 195712
    %88 = vst.msk [vmem:[#allocation0] sm:$0x1] %vm87, %v86
    %s89 = scalar_lea.vmem %s0, 1
    %v90 = vld [vmem:[%s89] sm:$0x1]
    %91 = vrot.lane.b32.xlu0 %v90, 8
    %v92 = vpop.permute.xlu0 %91
    %vm93 = vcmask 130112
    %94 = vst.msk [vmem:[#allocation0] sm:$0x1] %vm93, %v92
    %s96 = sshllo.u32 0, 1
    %v98 = vld [vmem:[#allocation0] sm:%s96]
    %s99 = sshllo.u32 0, 1
    %100 = vst [vmem:[%s1] sm:%s99] %v98

// kernel: basic_block_forward.1
$region0: #{basic_block_forward.1}
  #allocation0 [shape = 'u32[]', space=smem, size = 0x4, offset = 0x4, fixed_abs, tag = 'smem constant byte address 0x4 - core index']
  #allocation1 [shape = 'u32[144,128]{1,0:T(1,128)}', space=vmem, size = 0x12000, scoped, tag = 'internal scratch']
  %s0 = inlined_call_operand.vmem [shape: bf16[32,64], index: 0, kind: input, shape index: {}]
  %s1 = inlined_call_operand.vmem [shape: bf16[192,128], index: 1, kind: input, shape index: {}]
  %s2 = inlined_call_operand.vmem [shape: f32[1,128], index: 2, kind: input, shape index: {}]
  %s3 = inlined_call_operand.vmem [shape: f32[1,128], index: 3, kind: input, shape index: {}]
  %s4 = inlined_call_operand.vmem [shape: bf16[384,128], index: 4, kind: input, shape index: {}]
  %s5 = inlined_call_operand.vmem [shape: f32[1,128], index: 5, kind: input, shape index: {}]
  %s6 = inlined_call_operand.vmem [shape: f32[1,128], index: 6, kind: input, shape index: {}]
  %s7 = inlined_call_operand.vmem [shape: f32[32,128], index: 7, kind: output, shape index: {}]
  %s8 = sld [smem:[#allocation0]]
  $region38: #{basic_block_forward.1} parent=0
    _
  %s10 = ssub.s32 1, %s8
  %s11 = scalar_select 0, %s10, %s8
  // Predicated region
  $region2: #{basic_block_forward.1} parent=0 // pred_check
    _
  $region3: #{basic_block_forward.1} parent=0 // pred_check_branch
    %13 = sbr.rel (0) target = $region5
  $region4: #{basic_block_forward.1} parent=0 // pred_region
    _
  $region5: #{basic_block_forward.1} parent=0 // pred_fallthru
    _
  // Predicated region
  $region6: #{basic_block_forward.1} parent=0 // pred_check
    _
  $region7: #{basic_block_forward.1} parent=0 // pred_check_branch
    %15 = sbr.rel (0) target = $region9
  $region8: #{basic_block_forward.1} parent=0 // pred_region
    _
  $region9: #{basic_block_forward.1} parent=0 // pred_fallthru
    _
  // Predicated region
  $region10: #{basic_block_forward.1} parent=0 // pred_check
    _
  $region11: #{basic_block_forward.1} parent=0 // pred_check_branch
    %17 = sbr.rel (0) target = $region13
  $region12: #{basic_block_forward.1} parent=0 // pred_region
    _
  $region13: #{basic_block_forward.1} parent=0 // pred_fallthru
    _
  // Predicated region
  $region14: #{basic_block_forward.1} parent=0 // pred_check
    _
  $region15: #{basic_block_forward.1} parent=0 // pred_check_branch
    %19 = sbr.rel (0) target = $region17
  $region16: #{basic_block_forward.1} parent=0 // pred_region
    _
  $region17: #{basic_block_forward.1} parent=0 // pred_fallthru
    _
  // Predicated region
  $region18: #{basic_block_forward.1} parent=0 // pred_check
    _
  $region19: #{basic_block_forward.1} parent=0 // pred_check_branch
    %21 = sbr.rel (0) target = $region21
  $region20: #{basic_block_forward.1} parent=0 // pred_region
    _
  $region21: #{basic_block_forward.1} parent=0 // pred_fallthru
    _
  // Predicated region
  $region22: #{basic_block_forward.1} parent=0 // pred_check
    _
  $region23: #{basic_block_forward.1} parent=0 // pred_check_branch
    %23 = sbr.rel (0) target = $region25
  $region24: #{basic_block_forward.1} parent=0 // pred_region
    _
  $region25: #{basic_block_forward.1} parent=0 // pred_fallthru
    _
  // Predicated region
  $region26: #{basic_block_forward.1} parent=0 // pred_check
    _
  $region27: #{basic_block_forward.1} parent=0 // pred_check_branch
    %25 = sbr.rel (0) target = $region29
  $region28: #{basic_block_forward.1} parent=0 // pred_region
    _
  $region29: #{basic_block_forward.1} parent=0 // pred_fallthru
    _
  %v27 = vlaneseq
  %v28 = vshrl.u32 %v27, 7
  %v29 = vadd.s32 %v28, 8
  %v30 = vadd.s32 %v28, 16
  %v31 = vadd.s32 %v28, 24
  %vm32 = vcmp.lt.s32.totalorder %v28, 0
  %v33 = vsub.s32 0, %v28
  %v34 = vsel %vm32, %v33, %v28
  %v35 = vshrl.u32 %v34, 4
  %v36 = vand.u32 %v34, 15
  %v37 = vsub.s32 0, %v36
  %v38 = vsel %vm32, %v37, %v36
  %vm39 = vcmp.lt.s32.totalorder %v29, 0
  %v40 = vsub.s32 0, %v29
  %v41 = vsel %vm39, %v40, %v29
  %v42 = vshrl.u32 %v41, 4
  %v43 = vand.u32 %v41, 15
  %v44 = vsub.s32 0, %v43
  %v45 = vsel %vm39, %v44, %v43
  %vm46 = vcmp.lt.s32.totalorder %v30, 0
  %v47 = vsub.s32 0, %v30
  %v48 = vsel %vm46, %v47, %v30
  %v49 = vshrl.u32 %v48, 4
  %v50 = vand.u32 %v48, 15
  %v51 = vsub.s32 0, %v50
  %v52 = vsel %vm46, %v51, %v50
  %vm53 = vcmp.lt.s32.totalorder %v31, 0
  %v54 = vsub.s32 0, %v31
  %v55 = vsel %vm53, %v54, %v31
  %v56 = vshrl.u32 %v55, 4
  %v57 = vand.u32 %v55, 15
  %v58 = vsub.s32 0, %v57
  %v59 = vsel %vm53, %v58, %v57
  %vm60 = vcmp.ne.s32.totalorder %v38, 0
  %vm61 = vcmp.ne.s32.totalorder %v45, 0
  %vm62 = vcmp.ne.s32.totalorder %v52, 0
  %vm63 = vcmp.ne.s32.totalorder %v59, 0
  %vm64 = vcmp.lt.s32.totalorder %v38, 0
  %vm65 = vcmp.lt.s32.totalorder %v45, 0
  %vm66 = vcmp.lt.s32.totalorder %v52, 0
  %vm67 = vcmp.lt.s32.totalorder %v59, 0
  %vm68 = vmand %vm64, %vm60
  %vm69 = vmand %vm65, %vm61
  %vm70 = vmand %vm66, %vm62
  %vm71 = vmand %vm67, %vm63
  %v72 = vadd.s32 %v38, 16
  %v73 = vadd.s32 %v45, 16
  %v74 = vadd.s32 %v52, 16
  %v75 = vadd.s32 %v59, 16
  %v76 = vsel %vm68, %v72, %v38
  %v77 = vsel %vm69, %v73, %v45
  %v78 = vsel %vm70, %v74, %v52
  %v79 = vsel %vm71, %v75, %v59
  %vm80 = vcmp.ge.s32.totalorder %v76, 1
  %vm81 = vcmp.ge.s32.totalorder %v77, 1
  %vm82 = vcmp.ge.s32.totalorder %v78, 1
  %vm83 = vcmp.ge.s32.totalorder %v79, 1
  %v84 = vsel %vm80, 1, 0
  %v85 = vsel %vm81, 1, 0
  %v86 = vsel %vm82, 1, 0
  %v87 = vsel %vm83, 1, 0
  %v88 = vcvt.s32.f32 %v84
  %v89 = vcvt.s32.f32 %v85
  %v90 = vcvt.s32.f32 %v86
  %v91 = vcvt.s32.f32 %v87
  %vm92 = vcmp.le.s32.totalorder %v76, 14
  %vm93 = vcmp.le.s32.totalorder %v77, 14
  %vm94 = vcmp.le.s32.totalorder %v78, 14
  %vm95 = vcmp.le.s32.totalorder %v79, 14
  %v96 = vsel %vm92, 1, 0
  %v97 = vsel %vm93, 1, 0
  %v98 = vsel %vm94, 1, 0
  %v99 = vsel %vm95, 1, 0
  %v100 = vcvt.s32.f32 %v96
  %v101 = vcvt.s32.f32 %v97
  %v102 = vcvt.s32.f32 %v98
  %v103 = vcvt.s32.f32 %v99
  %v104 = vld [vmem:[%s0] sm:$0xf]
  %v105 = vld [vmem:[%s0 + $0x4] sm:$0xf]
  %v106 = vld [vmem:[%s0 + $0x8] sm:$0xf]
  %v107 = vld [vmem:[%s0 + $0xc] sm:$0xf]
  %v108 = vunpack.c.l.bf16 %v104
  %v109 = vunpack.c.l.bf16 %v105
  %v110 = vunpack.c.l.bf16 %v106
  %v111 = vunpack.c.l.bf16 %v107
  %v112 = vrot.slane %v108, 7
  %v113 = vrot.slane %v109, 7
  %v114 = vrot.slane %v110, 7
  %v115 = vrot.slane %v111, 7
  %vm116 = vcmp.lt.s32.totalorder %v28, 1
  %v117 = vsel %vm116, %v114, %v115
  %v118 = vsel %vm116, %v113, %v114
  %v119 = vsel %vm116, %v112, %v113
  %v120 = vsel %vm116, %v115, %v112
  %v121 = vmul.f32 %v120, %v88
  %v122 = vmul.f32 %v119, %v89
  %v123 = vmul.f32 %v118, %v90
  %v124 = vmul.f32 %v117, %v91
  %v125 = vrot.slane %v108, 1
  %v126 = vrot.slane %v109, 1
  %v127 = vrot.slane %v110, 1
  %v128 = vrot.slane %v111, 1
  %vm129 = vcmp.lt.s32.totalorder %v28, 7
  %v130 = vsel %vm129, %v127, %v128
  %v131 = vsel %vm129, %v126, %v127
  %v132 = vsel %vm129, %v125, %v126
  %v133 = vsel %vm129, %v128, %v125
  %v134 = vmul.f32 %v132, %v100
  %v135 = vmul.f32 %v131, %v101
  %v136 = vmul.f32 %v130, %v102
  %v137 = vmul.f32 %v133, %v103
  %v138 = vpack.c.bf16 %v122, %v121
  %v139 = vpack.c.bf16 %v124, %v123
  %v140 = vld [vmem:[%s1] sm:$0xf]
  %v141 = vld [vmem:[%s1 + $0x4] sm:$0xf]
  %v142 = vld [vmem:[%s1 + $0x8] sm:$0xf]
  %v143 = vld [vmem:[%s1 + $0xc] sm:$0xf]
  %v144 = vld [vmem:[%s1 + $0x10] sm:$0xf]
  %v145 = vld [vmem:[%s1 + $0x14] sm:$0xf]
  %v146 = vld [vmem:[%s1 + $0x18] sm:$0xf]
  %v147 = vld [vmem:[%s1 + $0x1c] sm:$0xf]
  %v148 = vld [vmem:[%s1 + $0x20] sm:$0xf]
  %v149 = vld [vmem:[%s1 + $0x24] sm:$0xf]
  %v150 = vld [vmem:[%s1 + $0x28] sm:$0xf]
  %v151 = vld [vmem:[%s1 + $0x2c] sm:$0xf]
  %v152 = vld [vmem:[%s1 + $0x30] sm:$0xf]
  %v153 = vld [vmem:[%s1 + $0x34] sm:$0xf]
  %v154 = vld [vmem:[%s1 + $0x38] sm:$0xf]
  %v155 = vld [vmem:[%s1 + $0x3c] sm:$0xf]
  %v160 = vunpack.c.l.b16 %v104
  %v161 = vunpack.c.l.b16 %v105
  %v162 = vunpack.c.l.b16 %v106
  %v163 = vunpack.c.l.b16 %v107
  %v164 = vpack.c.b16 %v161, %v160
  %v165 = vpack.c.b16 %v163, %v162
  %v174 = vunpack.c.l.b16 %v148
  %v175 = vunpack.c.l.b16 %v149
  %v176 = vunpack.c.l.b16 %v150
  %v177 = vunpack.c.l.b16 %v151
  %v178 = vunpack.c.l.b16 %v152
  %v179 = vunpack.c.l.b16 %v153
  %v180 = vunpack.c.l.b16 %v154
  %v181 = vunpack.c.l.b16 %v155
  %v182 = vpack.c.b16 %v175, %v174
  %v183 = vpack.c.b16 %v177, %v176
  %v184 = vpack.c.b16 %v179, %v178
  %v185 = vpack.c.b16 %v181, %v180
  %vm190 = vcmask 523264
  %v192 = vsel %vm190, %v164, 0
  %v195 = vsel %vm190, %v165, 0
  %197 = vmatprep.subr.bf16.mxu0 0
  %198 = vmatpush1.bf16.msra.mxu0 %v182
  %199 = vmatprep.subr.bf16.mxu0 0
  %200 = vmatpush1.bf16.msra.mxu0 %v183
  %201 = vmatprep.subr.bf16.mxu0 0
  %202 = vmatpush1.bf16.msra.mxu0 %v184
  %203 = vmatprep.subr.bf16.mxu0 0
  %204 = vmatpush1.bf16.msra.mxu0 %v185
  %205 = vmatprep.subr.bf16.mxu0 0
  %206 = vmatpush1.bf16.msra.mxu0 0
  %207 = vmatprep.subr.bf16.mxu0 0
  %208 = vmatpush1.bf16.msra.mxu0 0
  %209 = vmatprep.subr.bf16.mxu0 0
  %210 = vmatpush1.bf16.msra.mxu0 0
  %211 = vmatprep.subr.bf16.mxu0 0
  %212 = vmatpush1.bf16.msra.mxu0 0
  %213 = vmatprep.subr.bf16.mxu0 0
  %214 = vmatpush1.bf16.msra.mxu0 0
  %215 = vmatprep.subr.bf16.mxu0 0
  %216 = vmatpush1.bf16.msra.mxu0 0
  %217 = vmatprep.subr.bf16.mxu0 0
  %218 = vmatpush1.bf16.msra.mxu0 0
  %219 = vmatprep.subr.bf16.mxu0 0
  %220 = vmatpush1.bf16.msra.mxu0 0
  %221 = vmatprep.subr.bf16.mxu0 0
  %222 = vmatpush1.bf16.msra.mxu0 0
  %223 = vmatprep.subr.bf16.mxu0 0
  %224 = vmatpush1.bf16.msra.mxu0 0
  %225 = vmatprep.subr.bf16.mxu0 0
  %226 = vmatpush1.bf16.msra.mxu0 0
  %227 = vmatprep.subr.bf16.mxu0 0
  %228 = vmatpush1.bf16.msra.mxu0 0
  %229 = vmatprep.mubr.bf16.mxu0 0
  %230 = vmatmul.mubr.bf16.gmra.mrb[0].mxu0 %v192
  %v231 = vpop.f32.mrb[0].mxu0
  %v232 = vadd.f32 0.0, %v231
  %v233 = vpop.f32.mrb[0].mxu0
  %v234 = vpop.f32.mrb[0].mxu0
  %v235 = vadd.f32 0.0, %v234
  %v236 = vpop.f32.mrb[0].mxu0
  %237 = vmatprep.mubr.bf16.mxu0 0
  %238 = vmatmul.mubr.bf16.gmra.mrb[0].mxu0 %v195
  %v239 = vpop.f32.mrb[0].mxu0
  %v240 = vadd.f32 0.0, %v239
  %v241 = vpop.f32.mrb[0].mxu0
  %v242 = vpop.f32.mrb[0].mxu0
  %v243 = vadd.f32 0.0, %v242
  %v244 = vpop.f32.mrb[0].mxu0
  %245 = vdwg.mxu0
  %v254 = vunpack.c.l.b16 %v140
  %v255 = vunpack.c.l.b16 %v141
  %v256 = vunpack.c.l.b16 %v142
  %v257 = vunpack.c.l.b16 %v143
  %v258 = vunpack.c.l.b16 %v144
  %v259 = vunpack.c.l.b16 %v145
  %v260 = vunpack.c.l.b16 %v146
  %v261 = vunpack.c.l.b16 %v147
  %v262 = vpack.c.b16 %v255, %v254
  %v263 = vpack.c.b16 %v257, %v256
  %v264 = vpack.c.b16 %v259, %v258
  %v265 = vpack.c.b16 %v261, %v260
  %v271 = vsel %vm190, %v138, 0
  %v274 = vsel %vm190, %v139, 0
  %276 = vmatprep.subr.bf16.mxu0 0
  %277 = vmatpush1.bf16.msra.mxu0 %v262
  %278 = vmatprep.subr.bf16.mxu0 0
  %279 = vmatpush1.bf16.msra.mxu0 %v263
  %280 = vmatprep.subr.bf16.mxu0 0
  %281 = vmatpush1.bf16.msra.mxu0 %v264
  %282 = vmatprep.subr.bf16.mxu0 0
  %283 = vmatpush1.bf16.msra.mxu0 %v265
  %284 = vmatprep.subr.bf16.mxu0 0
  %285 = vmatpush1.bf16.msra.mxu0 0
  %286 = vmatprep.subr.bf16.mxu0 0
  %287 = vmatpush1.bf16.msra.mxu0 0
  %288 = vmatprep.subr.bf16.mxu0 0
  %289 = vmatpush1.bf16.msra.mxu0 0
  %290 = vmatprep.subr.bf16.mxu0 0
  %291 = vmatpush1.bf16.msra.mxu0 0
  %292 = vmatprep.subr.bf16.mxu0 0
  %293 = vmatpush1.bf16.msra.mxu0 0
  %294 = vmatprep.subr.bf16.mxu0 0
  %295 = vmatpush1.bf16.msra.mxu0 0
  %296 = vmatprep.subr.bf16.mxu0 0
  %297 = vmatpush1.bf16.msra.mxu0 0
  %298 = vmatprep.subr.bf16.mxu0 0
  %299 = vmatpush1.bf16.msra.mxu0 0
  %300 = vmatprep.subr.bf16.mxu0 0
  %301 = vmatpush1.bf16.msra.mxu0 0
  %302 = vmatprep.subr.bf16.mxu0 0
  %303 = vmatpush1.bf16.msra.mxu0 0
  %304 = vmatprep.subr.bf16.mxu0 0
  %305 = vmatpush1.bf16.msra.mxu0 0
  %306 = vmatprep.subr.bf16.mxu0 0
  %307 = vmatpush1.bf16.msra.mxu0 0
  %308 = vmatprep.mubr.bf16.mxu0 0
  %309 = vmatmul.mubr.bf16.gmra.mrb[0].mxu0 %v271
  %v310 = vpop.f32.mrb[0].mxu0
  %v311 = vadd.f32 %v232, %v310
  %v312 = vpop.f32.mrb[0].mxu0
  %v313 = vpop.f32.mrb[0].mxu0
  %v314 = vadd.f32 %v235, %v313
  %v315 = vpop.f32.mrb[0].mxu0
  %316 = vmatprep.mubr.bf16.mxu0 0
  %317 = vmatmul.mubr.bf16.gmra.mrb[0].mxu0 %v274
  %v318 = vpop.f32.mrb[0].mxu0
  %v319 = vadd.f32 %v240, %v318
  %v320 = vpop.f32.mrb[0].mxu0
  %v321 = vpop.f32.mrb[0].mxu0
  %v322 = vadd.f32 %v243, %v321
  %v323 = vpop.f32.mrb[0].mxu0
  %324 = vdwg.mxu0
  %v325 = vpack.c.bf16 %v135, %v134
  %v326 = vpack.c.bf16 %v137, %v136
  %v327 = vld [vmem:[%s1 + $0x40] sm:$0xf]
  %v328 = vld [vmem:[%s1 + $0x44] sm:$0xf]
  %v329 = vld [vmem:[%s1 + $0x48] sm:$0xf]
  %v330 = vld [vmem:[%s1 + $0x4c] sm:$0xf]
  %v331 = vld [vmem:[%s1 + $0x50] sm:$0xf]
  %v332 = vld [vmem:[%s1 + $0x54] sm:$0xf]
  %v333 = vld [vmem:[%s1 + $0x58] sm:$0xf]
  %v334 = vld [vmem:[%s1 + $0x5c] sm:$0xf]
  %v343 = vunpack.c.l.b16 %v327
  %v344 = vunpack.c.l.b16 %v328
  %v345 = vunpack.c.l.b16 %v329
  %v346 = vunpack.c.l.b16 %v330
  %v347 = vunpack.c.l.b16 %v331
  %v348 = vunpack.c.l.b16 %v332
  %v349 = vunpack.c.l.b16 %v333
  %v350 = vunpack.c.l.b16 %v334
  %v351 = vpack.c.b16 %v344, %v343
  %v352 = vpack.c.b16 %v346, %v345
  %v353 = vpack.c.b16 %v348, %v347
  %v354 = vpack.c.b16 %v350, %v349
  %v360 = vsel %vm190, %v325, 0
  %v363 = vsel %vm190, %v326, 0
  %365 = vmatprep.subr.bf16.mxu0 0
  %366 = vmatpush1.bf16.msra.mxu0 %v351
  %367 = vmatprep.subr.bf16.mxu0 0
  %368 = vmatpush1.bf16.msra.mxu0 %v352
  %369 = vmatprep.subr.bf16.mxu0 0
  %370 = vmatpush1.bf16.msra.mxu0 %v353
  %371 = vmatprep.subr.bf16.mxu0 0
  %372 = vmatpush1.bf16.msra.mxu0 %v354
  %373 = vmatprep.subr.bf16.mxu0 0
  %374 = vmatpush1.bf16.msra.mxu0 0
  %375 = vmatprep.subr.bf16.mxu0 0
  %376 = vmatpush1.bf16.msra.mxu0 0
  %377 = vmatprep.subr.bf16.mxu0 0
  %378 = vmatpush1.bf16.msra.mxu0 0
  %379 = vmatprep.subr.bf16.mxu0 0
  %380 = vmatpush1.bf16.msra.mxu0 0
  %381 = vmatprep.subr.bf16.mxu0 0
  %382 = vmatpush1.bf16.msra.mxu0 0
  %383 = vmatprep.subr.bf16.mxu0 0
  %384 = vmatpush1.bf16.msra.mxu0 0
  %385 = vmatprep.subr.bf16.mxu0 0
  %386 = vmatpush1.bf16.msra.mxu0 0
  %387 = vmatprep.subr.bf16.mxu0 0
  %388 = vmatpush1.bf16.msra.mxu0 0
  %389 = vmatprep.subr.bf16.mxu0 0
  %390 = vmatpush1.bf16.msra.mxu0 0
  %391 = vmatprep.subr.bf16.mxu0 0
  %392 = vmatpush1.bf16.msra.mxu0 0
  %393 = vmatprep.subr.bf16.mxu0 0
  %394 = vmatpush1.bf16.msra.mxu0 0
  %395 = vmatprep.subr.bf16.mxu0 0
  %396 = vmatpush1.bf16.msra.mxu0 0
  %397 = vmatprep.mubr.bf16.mxu0 0
  %398 = vmatmul.mubr.bf16.gmra.mrb[0].mxu0 %v360
  %v399 = vpop.f32.mrb[0].mxu0
  %v400 = vadd.f32 0.0, %v399
  %v401 = vpop.f32.mrb[0].mxu0
  %v402 = vpop.f32.mrb[0].mxu0
  %v403 = vadd.f32 0.0, %v402
  %v404 = vpop.f32.mrb[0].mxu0
  %405 = vmatprep.mubr.bf16.mxu0 0
  %406 = vmatmul.mubr.bf16.gmra.mrb[0].mxu0 %v363
  %v407 = vpop.f32.mrb[0].mxu0
  %v408 = vadd.f32 0.0, %v407
  %v409 = vpop.f32.mrb[0].mxu0
  %v410 = vpop.f32.mrb[0].mxu0
  %v411 = vadd.f32 0.0, %v410
  %v412 = vpop.f32.mrb[0].mxu0
  %413 = vdwg.mxu0
  %v414 = vadd.f32 %v311, %v400
  %v415 = vadd.f32 %v314, %v403
  %v416 = vadd.f32 %v319, %v408
  %v417 = vadd.f32 %v322, %v411
  %v418 = vld [vmem:[%s2] sm:$0x1]
  %v420 = vlaneseq
  %v421 = vshrl.u32 %v420, 7
  %v422 = vsub.s32 0, %v421
  %v423 = vrot.slane %v418, %v422
  %v425 = vmul.f32 %v414, %v423
  %v426 = vmul.f32 %v415, %v423
  %v427 = vmul.f32 %v416, %v423
  %v428 = vmul.f32 %v417, %v423
  %v429 = vld [vmem:[%s3] sm:$0x1]
  %v431 = vlaneseq
  %v432 = vshrl.u32 %v431, 7
  %v433 = vsub.s32 0, %v432
  %v434 = vrot.slane %v429, %v433
  %v436 = vadd.f32 %v425, %v434
  %v437 = vadd.f32 %v426, %v434
  %v438 = vadd.f32 %v427, %v434
  %v439 = vadd.f32 %v428, %v434
  %v440 = vmax.f32 %v436, 0.0
  %v441 = vmax.f32 %v437, 0.0
  %v442 = vmax.f32 %v438, 0.0
  %v443 = vmax.f32 %v439, 0.0
  %v444 = vrot.slane %v440, 7
  %v445 = vrot.slane %v441, 7
  %v446 = vrot.slane %v442, 7
  %v447 = vrot.slane %v443, 7
  %v448 = vsel %vm116, %v446, %v447
  %v449 = vsel %vm116, %v445, %v446
  %v450 = vsel %vm116, %v444, %v445
  %v451 = vsel %vm116, %v447, %v444
  %v452 = vmul.f32 %v451, %v88
  %v453 = vmul.f32 %v450, %v89
  %v454 = vmul.f32 %v449, %v90
  %v455 = vmul.f32 %v448, %v91
  %v456 = vrot.slane %v440, 1
  %v457 = vrot.slane %v441, 1
  %v458 = vrot.slane %v442, 1
  %v459 = vrot.slane %v443, 1
  %v460 = vsel %vm129, %v458, %v459
  %v461 = vsel %vm129, %v457, %v458
  %v462 = vsel %vm129, %v456, %v457
  %v463 = vsel %vm129, %v459, %v456
  %v464 = vmul.f32 %v462, %v100
  %v465 = vmul.f32 %v461, %v101
  %v466 = vmul.f32 %v460, %v102
  %v467 = vmul.f32 %v463, %v103
  %v468 = vpack.c.bf16 %v453, %v452
  %v469 = vpack.c.bf16 %v441, %v440
  %v470 = vpack.c.bf16 %v465, %v464
  %v471 = vpack.c.bf16 %v455, %v454
  %v472 = vpack.c.bf16 %v443, %v442
  %v473 = vpack.c.bf16 %v467, %v466
  %v474 = vld [vmem:[%s4] sm:$0xf]
  %v475 = vld [vmem:[%s4 + $0x4] sm:$0xf]
  %v476 = vld [vmem:[%s4 + $0x8] sm:$0xf]
  %v477 = vld [vmem:[%s4 + $0xc] sm:$0xf]
  %v478 = vld [vmem:[%s4 + $0x10] sm:$0xf]
  %v479 = vld [vmem:[%s4 + $0x14] sm:$0xf]
  %v480 = vld [vmem:[%s4 + $0x18] sm:$0xf]
  %v481 = vld [vmem:[%s4 + $0x1c] sm:$0xf]
  %v482 = vld [vmem:[%s4 + $0x20] sm:$0xf]
  %v483 = vld [vmem:[%s4 + $0x24] sm:$0xf]
  %v484 = vld [vmem:[%s4 + $0x28] sm:$0xf]
  %v485 = vld [vmem:[%s4 + $0x2c] sm:$0xf]
  %v486 = vld [vmem:[%s4 + $0x30] sm:$0xf]
  %v487 = vld [vmem:[%s4 + $0x34] sm:$0xf]
  %v488 = vld [vmem:[%s4 + $0x38] sm:$0xf]
  %v489 = vld [vmem:[%s4 + $0x3c] sm:$0xf]
  %v490 = vld [vmem:[%s4 + $0x40] sm:$0xf]
  %v491 = vld [vmem:[%s4 + $0x44] sm:$0xf]
  %v492 = vld [vmem:[%s4 + $0x48] sm:$0xf]
  %v493 = vld [vmem:[%s4 + $0x4c] sm:$0xf]
  %v494 = vld [vmem:[%s4 + $0x50] sm:$0xf]
  %v495 = vld [vmem:[%s4 + $0x54] sm:$0xf]
  %v496 = vld [vmem:[%s4 + $0x58] sm:$0xf]
  %v497 = vld [vmem:[%s4 + $0x5c] sm:$0xf]
  %v498 = vld [vmem:[%s4 + $0x60] sm:$0xf]
  %v499 = vld [vmem:[%s4 + $0x64] sm:$0xf]
  %v500 = vld [vmem:[%s4 + $0x68] sm:$0xf]
  %v501 = vld [vmem:[%s4 + $0x6c] sm:$0xf]
  %v502 = vld [vmem:[%s4 + $0x70] sm:$0xf]
  %v503 = vld [vmem:[%s4 + $0x74] sm:$0xf]
  %v504 = vld [vmem:[%s4 + $0x78] sm:$0xf]
  %v505 = vld [vmem:[%s4 + $0x7c] sm:$0xf]
  %v506 = vld [vmem:[%s4 + $0x80] sm:$0xf]
  %v507 = vld [vmem:[%s4 + $0x84] sm:$0xf]
  %v508 = vld [vmem:[%s4 + $0x88] sm:$0xf]
  %v509 = vld [vmem:[%s4 + $0x8c] sm:$0xf]
  %v510 = vld [vmem:[%s4 + $0x90] sm:$0xf]
  %v511 = vld [vmem:[%s4 + $0x94] sm:$0xf]
  %v512 = vld [vmem:[%s4 + $0x98] sm:$0xf]
  %v513 = vld [vmem:[%s4 + $0x9c] sm:$0xf]
  %v514 = vld [vmem:[%s4 + $0xa0] sm:$0xf]
  %v515 = vld [vmem:[%s4 + $0xa4] sm:$0xf]
  %v516 = vld [vmem:[%s4 + $0xa8] sm:$0xf]
  %v517 = vld [vmem:[%s4 + $0xac] sm:$0xf]
  %v518 = vld [vmem:[%s4 + $0xb0] sm:$0xf]
  %v519 = vld [vmem:[%s4 + $0xb4] sm:$0xf]
  %v520 = vld [vmem:[%s4 + $0xb8] sm:$0xf]
  %v521 = vld [vmem:[%s4 + $0xbc] sm:$0xf]
  %v570 = vunpack.c.l.b16 %v474
  %v571 = vunpack.c.l.b16 %v475
  %v572 = vunpack.c.l.b16 %v476
  %v573 = vunpack.c.l.b16 %v477
  %v574 = vunpack.c.l.b16 %v478
  %v575 = vunpack.c.l.b16 %v479
  %v576 = vunpack.c.l.b16 %v480
  %v577 = vunpack.c.l.b16 %v481
  %v578 = vunpack.c.l.b16 %v482
  %v579 = vunpack.c.l.b16 %v483
  %v580 = vunpack.c.l.b16 %v484
  %v581 = vunpack.c.l.b16 %v485
  %v582 = vunpack.c.l.b16 %v486
  %v583 = vunpack.c.l.b16 %v487
  %v584 = vunpack.c.l.b16 %v488
  %v585 = vunpack.c.l.b16 %v489
  %v586 = vunpack.c.l.b16 %v490
  %v587 = vunpack.c.l.b16 %v491
  %v588 = vunpack.c.l.b16 %v492
  %v589 = vunpack.c.l.b16 %v493
  %v590 = vunpack.c.l.b16 %v494
  %v591 = vunpack.c.l.b16 %v495
  %v592 = vunpack.c.l.b16 %v496
  %v593 = vunpack.c.l.b16 %v497
  %v594 = vunpack.c.l.b16 %v498
  %v595 = vunpack.c.l.b16 %v499
  %v596 = vunpack.c.l.b16 %v500
  %v597 = vunpack.c.l.b16 %v501
  %v598 = vunpack.c.l.b16 %v502
  %v599 = vunpack.c.l.b16 %v503
  %v600 = vunpack.c.l.b16 %v504
  %v601 = vunpack.c.l.b16 %v505
  %v602 = vunpack.c.l.b16 %v506
  %v603 = vunpack.c.l.b16 %v507
  %v604 = vunpack.c.l.b16 %v508
  %v605 = vunpack.c.l.b16 %v509
  %v606 = vunpack.c.l.b16 %v510
  %v607 = vunpack.c.l.b16 %v511
  %v608 = vunpack.c.l.b16 %v512
  %v609 = vunpack.c.l.b16 %v513
  %v610 = vunpack.c.l.b16 %v514
  %v611 = vunpack.c.l.b16 %v515
  %v612 = vunpack.c.l.b16 %v516
  %v613 = vunpack.c.l.b16 %v517
  %v614 = vunpack.c.l.b16 %v518
  %v615 = vunpack.c.l.b16 %v519
  %v616 = vunpack.c.l.b16 %v520
  %v617 = vunpack.c.l.b16 %v521
  %v618 = vpack.c.b16 %v571, %v570
  %v619 = vpack.c.b16 %v573, %v572
  %v620 = vpack.c.b16 %v575, %v574
  %v621 = vpack.c.b16 %v577, %v576
  %v622 = vpack.c.b16 %v579, %v578
  %v623 = vpack.c.b16 %v581, %v580
  %v624 = vpack.c.b16 %v583, %v582
  %v625 = vpack.c.b16 %v585, %v584
  %v626 = vpack.c.b16 %v587, %v586
  %v627 = vpack.c.b16 %v589, %v588
  %v628 = vpack.c.b16 %v591, %v590
  %v629 = vpack.c.b16 %v593, %v592
  %v630 = vpack.c.b16 %v595, %v594
  %v631 = vpack.c.b16 %v597, %v596
  %v632 = vpack.c.b16 %v599, %v598
  %v633 = vpack.c.b16 %v601, %v600
  %v634 = vpack.c.b16 %v603, %v602
  %v635 = vpack.c.b16 %v605, %v604
  %v636 = vpack.c.b16 %v607, %v606
  %v637 = vpack.c.b16 %v609, %v608
  %v638 = vpack.c.b16 %v611, %v610
  %v639 = vpack.c.b16 %v613, %v612
  %v640 = vpack.c.b16 %v615, %v614
  %v641 = vpack.c.b16 %v617, %v616
  %666 = vmatprep.subr.bf16.mxu0 0
  %667 = vmatpush1.bf16.msra.mxu0 %v618
  %668 = vmatprep.subr.bf16.mxu0 0
  %669 = vmatpush1.bf16.msra.mxu0 %v619
  %670 = vmatprep.subr.bf16.mxu0 0
  %671 = vmatpush1.bf16.msra.mxu0 %v620
  %672 = vmatprep.subr.bf16.mxu0 0
  %673 = vmatpush1.bf16.msra.mxu0 %v621
  %674 = vmatprep.subr.bf16.mxu0 0
  %675 = vmatpush1.bf16.msra.mxu0 %v622
  %676 = vmatprep.subr.bf16.mxu0 0
  %677 = vmatpush1.bf16.msra.mxu0 %v623
  %678 = vmatprep.subr.bf16.mxu0 0
  %679 = vmatpush1.bf16.msra.mxu0 %v624
  %680 = vmatprep.subr.bf16.mxu0 0
  %681 = vmatpush1.bf16.msra.mxu0 %v625
  %682 = vmatprep.subr.bf16.mxu0 0
  %683 = vmatpush1.bf16.msra.mxu0 %v626
  %684 = vmatprep.subr.bf16.mxu0 0
  %685 = vmatpush1.bf16.msra.mxu0 %v627
  %686 = vmatprep.subr.bf16.mxu0 0
  %687 = vmatpush1.bf16.msra.mxu0 %v628
  %688 = vmatprep.subr.bf16.mxu0 0
  %689 = vmatpush1.bf16.msra.mxu0 %v629
  %690 = vmatprep.subr.bf16.mxu0 0
  %691 = vmatpush1.bf16.msra.mxu0 %v630
  %692 = vmatprep.subr.bf16.mxu0 0
  %693 = vmatpush1.bf16.msra.mxu0 %v631
  %694 = vmatprep.subr.bf16.mxu0 0
  %695 = vmatpush1.bf16.msra.mxu0 %v632
  %696 = vmatprep.subr.bf16.mxu0 0
  %697 = vmatpush1.bf16.msra.mxu0 %v633
  %698 = vmatprep.mubr.bf16.mxu0 %v469
  %699 = vmatmul.mubr.bf16.gmra.mrb[0].mxu0 %v468
  %v700 = vpop.f32.mrb[0].mxu0
  %v701 = vadd.f32 0.0, %v700
  %v702 = vpop.f32.mrb[0].mxu0
  %v703 = vpop.f32.mrb[0].mxu0
  %v704 = vadd.f32 0.0, %v703
  %v705 = vpop.f32.mrb[0].mxu0
  %706 = vmatprep.mubr.bf16.mxu0 %v472
  %707 = vmatmul.mubr.bf16.gmra.mrb[0].mxu0 %v471
  %v708 = vpop.f32.mrb[0].mxu0
  %v709 = vadd.f32 0.0, %v708
  %v710 = vpop.f32.mrb[0].mxu0
  %v711 = vpop.f32.mrb[0].mxu0
  %v712 = vadd.f32 0.0, %v711
  %v713 = vpop.f32.mrb[0].mxu0
  %714 = vdwg.mxu0
  %715 = vmatprep.subr.bf16.mxu0 0
  %716 = vmatpush1.bf16.msra.mxu0 %v634
  %717 = vmatprep.subr.bf16.mxu0 0
  %718 = vmatpush1.bf16.msra.mxu0 %v635
  %719 = vmatprep.subr.bf16.mxu0 0
  %720 = vmatpush1.bf16.msra.mxu0 %v636
  %721 = vmatprep.subr.bf16.mxu0 0
  %722 = vmatpush1.bf16.msra.mxu0 %v637
  %723 = vmatprep.subr.bf16.mxu0 0
  %724 = vmatpush1.bf16.msra.mxu0 %v638
  %725 = vmatprep.subr.bf16.mxu0 0
  %726 = vmatpush1.bf16.msra.mxu0 %v639
  %727 = vmatprep.subr.bf16.mxu0 0
  %728 = vmatpush1.bf16.msra.mxu0 %v640
  %729 = vmatprep.subr.bf16.mxu0 0
  %730 = vmatpush1.bf16.msra.mxu0 %v641
  %731 = vmatprep.subr.bf16.mxu0 0
  %732 = vmatpush1.bf16.msra.mxu0 0
  %733 = vmatprep.subr.bf16.mxu0 0
  %734 = vmatpush1.bf16.msra.mxu0 0
  %735 = vmatprep.subr.bf16.mxu0 0
  %736 = vmatpush1.bf16.msra.mxu0 0
  %737 = vmatprep.subr.bf16.mxu0 0
  %738 = vmatpush1.bf16.msra.mxu0 0
  %739 = vmatprep.subr.bf16.mxu0 0
  %740 = vmatpush1.bf16.msra.mxu0 0
  %741 = vmatprep.subr.bf16.mxu0 0
  %742 = vmatpush1.bf16.msra.mxu0 0
  %743 = vmatprep.subr.bf16.mxu0 0
  %744 = vmatpush1.bf16.msra.mxu0 0
  %745 = vmatprep.subr.bf16.mxu0 0
  %746 = vmatpush1.bf16.msra.mxu0 0
  %747 = vmatprep.mubr.bf16.mxu0 0
  %748 = vmatmul.mubr.bf16.gmra.mrb[0].mxu0 %v470
  %v749 = vpop.f32.mrb[0].mxu0
  %v750 = vadd.f32 %v701, %v749
  %v751 = vpop.f32.mrb[0].mxu0
  %v752 = vpop.f32.mrb[0].mxu0
  %v753 = vadd.f32 %v704, %v752
  %v754 = vpop.f32.mrb[0].mxu0
  %755 = vmatprep.mubr.bf16.mxu0 0
  %756 = vmatmul.mubr.bf16.gmra.mrb[0].mxu0 %v473
  %v757 = vpop.f32.mrb[0].mxu0
  %v758 = vadd.f32 %v709, %v757
  %v759 = vpop.f32.mrb[0].mxu0
  %v760 = vpop.f32.mrb[0].mxu0
  %v761 = vadd.f32 %v712, %v760
  %v762 = vpop.f32.mrb[0].mxu0
  %763 = vdwg.mxu0
  %v764 = vld [vmem:[%s5] sm:$0x1]
  %v766 = vlaneseq
  %v767 = vshrl.u32 %v766, 7
  %v768 = vsub.s32 0, %v767
  %v769 = vrot.slane %v764, %v768
  %v771 = vmul.f32 %v750, %v769
  %v772 = vmul.f32 %v753, %v769
  %v773 = vmul.f32 %v758, %v769
  %v774 = vmul.f32 %v761, %v769
  %v775 = vld [vmem:[%s6] sm:$0x1]
  %v777 = vlaneseq
  %v778 = vshrl.u32 %v777, 7
  %v779 = vsub.s32 0, %v778
  %v780 = vrot.slane %v775, %v779
  %v782 = vadd.f32 %v771, %v780
  %v783 = vadd.f32 %v772, %v780
  %v784 = vadd.f32 %v773, %v780
  %v785 = vadd.f32 %v774, %v780
  %v786 = vmax.f32 %v782, 0.0
  %v787 = vmax.f32 %v783, 0.0
  %v788 = vmax.f32 %v784, 0.0
  %v789 = vmax.f32 %v785, 0.0
  %790 = vst [vmem:[%s7] sm:$0xff] %v786
  %791 = vst [vmem:[%s7 + $0x8] sm:$0xff] %v787
  %792 = vst [vmem:[%s7 + $0x10] sm:$0xff] %v788
  %793 = vst [vmem:[%s7 + $0x18] sm:$0xff] %v789
  // Predicated region
  $region30: #{basic_block_forward.1} parent=0 // pred_check
    _
  $region31: #{basic_block_forward.1} parent=0 // pred_check_branch
    %795 = sbr.rel (0) target = $region33
  $region32: #{basic_block_forward.1} parent=0 // pred_region
    _
  $region33: #{basic_block_forward.1} parent=0 // pred_fallthru
    _
  // Predicated region
  $region34: #{basic_block_forward.1} parent=0 // pred_check
    _
  $region35: #{basic_block_forward.1} parent=0 // pred_check_branch
    %797 = sbr.rel (0) target = $region37
  $region36: #{basic_block_forward.1} parent=0 // pred_region
    _
  $region37: #{basic_block_forward.1} parent=0 // pred_fallthru
    _

</llo_original>
